<compile_context>
chip_gen: v7x
topology: tpu7x:2x2x1
jax: 0.10.0
libtpu: 0.0.40
codegen_flags: <defaults>
</compile_context>

<pallas_src>
import jax
import jax.numpy as jnp
from jax.experimental import pallas as pl
from jax.experimental.pallas import tpu as pltpu


def _sagan_attention_kernel(gamma_ref, x_ref, phit_ref, g_ref, wt_ref, wo_ref,
                            out_ref):
    # gamma_ref: (1,) f32 in SMEM
    # x_ref    : (1, C, TQ)    pixel tile of x (channels-first, flat spatial)
    # phit_ref : (1, HWq, C8)  pooled phi projection, pre-transposed, bf16
    # g_ref    : (1, C2, HWq)  pooled g projection, bf16
    # wt_ref   : (C8, C)       theta 1x1-conv weight, bf16 (native torch layout)
    # wo_ref   : (C, C2)       output 1x1-conv weight, bf16 (native torch layout)
    # out_ref  : (1, C, TQ)
    bf16 = jnp.bfloat16
    x = x_ref[0]                                             # (C, TQ)

    # theta projection for this pixel tile (tiny: C8 x TQ).
    theta = jnp.dot(wt_ref[...], x.astype(bf16),
                    preferred_element_type=jnp.float32)      # (C8, TQ) f32

    # logits^T = phi_pooled^T @ theta  -> (HWq, TQ); plain matmul, no transpose.
    logits = jnp.dot(phit_ref[0], theta.astype(bf16),
                     preferred_element_type=jnp.float32)     # (HWq, TQ) f32

    # Softmax over the pooled-key (sublane) axis, f32 math, deferred norm.
    m = jnp.max(logits, axis=0, keepdims=True)               # (1, TQ)
    e = jnp.exp(logits - m)                                  # (HWq, TQ) f32
    denom = jnp.sum(e, axis=0, keepdims=True)                # (1, TQ) f32
    e16 = e.astype(bf16)                                     # half-size MXU feed

    attn = jnp.dot(g_ref[0], e16,
                   preferred_element_type=jnp.float32)       # (C2, TQ) f32
    attn = attn * pl.reciprocal(denom, approx=False)         # exact; tile is tiny

    o = jnp.dot(wo_ref[...], attn.astype(bf16),
                preferred_element_type=jnp.float32)          # (C, TQ) f32

    out_ref[0] = (gamma_ref[0] * o + x.astype(jnp.float32)).astype(out_ref.dtype)


def _pick_tq(hw, hwq, tq_max=512):
    """Largest multiple of 128 dividing HW that fits tq_max and the VMEM budget."""
    budget = 24 * 1024 * 1024            # bytes for the (HWq, TQ) f32 + bf16 pair
    cap = min(tq_max, hw)
    cap = min(cap, max(128, budget // max(hwq * 6, 1)))
    d = (cap // 128) * 128
    while d >= 128:
        if hw % d == 0:
            return d
        d -= 128
    # TODO(synk): HW with no multiple-of-128 divisor (odd image sizes) falls back
    # to a single whole-row tile; pad the pixel axis upstream for such shapes.
    return hw


def sagan_attention(x_nchw, w_theta, w_phi, w_g, w_o, gamma, *, tq=512):
    """SA-GAN attention forward.

    x_nchw : (B, C, H, W)
    w_theta: (C//8, C)  w_phi: (C//8, C)  w_g: (C//2, C)  w_o: (C, C//2)
             (1x1 conv weights with the trailing 1x1 squeezed, nn.Conv2d layout)
    gamma  : scalar
    """
    B, C, H, W = x_nchw.shape
    assert H % 2 == 0 and W % 2 == 0 and C % 8 == 0
    HW = H * W
    HWq = HW // 4
    C8, C2 = C // 8, C // 2
    bf16 = jnp.bfloat16

    TQ = _pick_tq(HW, HWq, tq)

    # Channels-first, spatially flattened view of x (pure metadata reshape).
    x_flat = x_nchw.reshape(B, C, HW)

    # Weights stay in their native (out_ch, in_ch) layout, pre-cast to bf16.
    wt16 = w_theta.astype(bf16)                               # (C8, C)
    wo16 = w_o.astype(bf16)                                   # (C, C2)

    # Pooled phi / g projections: computed once per call at true width in bf16
    # (f32 accumulation), max-pooled 2x2, cast to bf16 for the MXU.
    # max_pool2d(conv1x1(x), 2) == elementwise max over the 4 window offsets.
    x16 = x_nchw.astype(bf16)

    def pooled_proj(w):                                       # w: (K, C)
        y = jnp.einsum('kc,bchw->bkhw', w.astype(bf16), x16,
                       preferred_element_type=jnp.float32)    # (B, K, H, W) f32
        y = y.reshape(B, w.shape[0], H // 2, 2, W // 2, 2).max(axis=(3, 5))
        return y.reshape(B, w.shape[0], HWq).astype(bf16)

    phi_t = jnp.swapaxes(pooled_proj(w_phi), 1, 2)            # (B, HWq, C8) bf16
    g_p = pooled_proj(w_g)                                    # (B, C2, HWq) bf16

    gamma_arr = jnp.asarray(gamma, jnp.float32).reshape(1)

    resident = pl.Buffered(1)            # changes only on the batch axis
    grid = (B, HW // TQ)                 # (batch, pixel tile), both parallel

    # TODO(synk): for very large feature maps (HWq >~ 8192) add a key-chunk inner
    # axis (flash-style online softmax) so logits/e stay bounded; the current
    # version sizes TQ from the (HWq, TQ) footprint instead.
    out_flat = pl.pallas_call(
        _sagan_attention_kernel,
        out_shape=jax.ShapeDtypeStruct((B, C, HW), x_nchw.dtype),
        grid=grid,
        in_specs=[
            pl.BlockSpec(memory_space=pltpu.MemorySpace.SMEM),            # gamma
            pl.BlockSpec((1, C, TQ), lambda b, q: (b, 0, q)),             # x tile
            pl.BlockSpec((1, HWq, C8), lambda b, q: (b, 0, 0),
                         pipeline_mode=resident),                         # phi^T
            pl.BlockSpec((1, C2, HWq), lambda b, q: (b, 0, 0),
                         pipeline_mode=resident),                         # g
            pl.BlockSpec((C8, C), lambda b, q: (0, 0),
                         pipeline_mode=resident),                         # W_theta
            pl.BlockSpec((C, C2), lambda b, q: (0, 0),
                         pipeline_mode=resident),                         # W_o
        ],
        out_specs=pl.BlockSpec((1, C, TQ), lambda b, q: (b, 0, q)),
        compiler_params=pltpu.CompilerParams(
            dimension_semantics=("parallel", "parallel"),
            vmem_limit_bytes=48 * 1024 * 1024),
    )(gamma_arr, x_flat, phi_t, g_p, wt16, wo16)

    return out_flat.reshape(B, C, H, W)


def sagan_attention_reference(x, w_theta, w_phi, w_g, w_o, gamma):
    """Pure-JAX port of the PyTorch forward (NCHW), for verification."""
    B, C, H, W = x.shape
    C8, C2 = C // 8, C // 2
    xf = x.reshape(B, C, H * W)
    theta = jnp.einsum('oc,bcs->bos', w_theta, xf)                  # (B, C8, HW)
    phi = jnp.einsum('oc,bcs->bos', w_phi, xf).reshape(B, C8, H, W)
    g = jnp.einsum('oc,bcs->bos', w_g, xf).reshape(B, C2, H, W)

    def pool(t):
        b, c, h, w = t.shape
        return t.reshape(b, c, h // 2, 2, w // 2, 2).max(axis=(3, 5))

    phi = pool(phi).reshape(B, C8, H * W // 4)
    g = pool(g).reshape(B, C2, H * W // 4)
    logits = jnp.einsum('bcs,bct->bst', theta, phi)                 # (B, HW, HW/4)
    beta = jax.nn.softmax(logits, axis=-1)
    o = jnp.einsum('bct,bst->bcs', g, beta)                         # (B, C2, HW)
    o = jnp.einsum('oc,bcs->bos', w_o, o).reshape(B, C, H, W)       # w_o: (C, C2)
    return gamma * o + x


if __name__ == "__main__":
    B, C, H, W = 2, 16, 16, 16
    C8, C2 = C // 8, C // 2

    key = jax.random.PRNGKey(0)
    kx, kt, kp, kg, ko = jax.random.split(key, 5)
    x = jax.random.normal(kx, (B, C, H, W), dtype=jnp.float32)
    # 1x1 conv weights, stored squeezed as (out_ch, in_ch) -- matches nn.Conv2d.
    w_theta = jax.random.normal(kt, (C8, C), dtype=jnp.float32) * 0.1
    w_phi = jax.random.normal(kp, (C8, C), dtype=jnp.float32) * 0.1
    w_g = jax.random.normal(kg, (C2, C), dtype=jnp.float32) * 0.1
    w_o = jax.random.normal(ko, (C, C2), dtype=jnp.float32) * 0.1   # o: C/2 -> C
    # Module __init__ sets gamma=0.0 (which makes the block an identity);
    # use a deterministic nonzero value so the attention path is exercised.
    gamma = 0.5

    out = sagan_attention(x, w_theta, w_phi, w_g, w_o, gamma)
    out = jax.block_until_ready(out)

    ref = sagan_attention_reference(x, w_theta, w_phi, w_g, w_o, gamma)
    assert out.shape == ref.shape == (B, C, H, W)
    # The kernel feeds the MXU bf16 (f32 accumulate) and computes the pooled
    # projections in bf16, so compare against the exact-f32 reference with a
    # bf16-level tolerance.
    err = float(jnp.max(jnp.abs(out - ref)))
    assert err < 5e-2, err

    print("KERNEL_OK")
</pallas_src>

<mosaic_0001>
module attributes {stable_mosaic.version = 11 : i64} {
  func.func @_sagan_attention_kernel(%arg0: i32, %arg1: i32, %arg2: memref<1xf32, #tpu.memory_space<smem>>, %arg3: memref<1x16x256xf32, #tpu.memory_space<vmem>>, %arg4: memref<1x64x2xbf16, #tpu.memory_space<vmem>>, %arg5: memref<1x8x64xbf16, #tpu.memory_space<vmem>>, %arg6: memref<2x16xbf16, #tpu.memory_space<vmem>>, %arg7: memref<16x8xbf16, #tpu.memory_space<vmem>>, %arg8: memref<1x16x256xf32, #tpu.memory_space<vmem>>) attributes {dimension_semantics = [#tpu.dimension_semantics<parallel>, #tpu.dimension_semantics<parallel>], iteration_bounds = array<i64: 2, 1>, scalar_prefetch = 0 : i64, scratch_operands = 0 : i64, tpu.core_type = #tpu.core_type<tc>, window_params = [{transform_indices = @transform_0, window_bounds = array<i64: 1>}, {transform_indices = @transform_1, window_bounds = array<i64: 1, 16, 256>}, {pipeline_mode = #tpu.pipeline_mode<synchronous>, transform_indices = @transform_2, window_bounds = array<i64: 1, 64, 2>}, {pipeline_mode = #tpu.pipeline_mode<synchronous>, transform_indices = @transform_3, window_bounds = array<i64: 1, 8, 64>}, {pipeline_mode = #tpu.pipeline_mode<synchronous>, transform_indices = @transform_4, window_bounds = array<i64: 2, 16>}, {pipeline_mode = #tpu.pipeline_mode<synchronous>, transform_indices = @transform_5, window_bounds = array<i64: 16, 8>}, {transform_indices = @transform_6, window_bounds = array<i64: 1, 16, 256>}]} {
    %c0 = arith.constant 0 : index
    %c0_0 = arith.constant 0 : index
    %c0_1 = arith.constant 0 : index
    %0 = vector.load %arg3[%c0, %c0_0, %c0_1] : memref<1x16x256xf32, #tpu.memory_space<vmem>>, vector<1x16x256xf32>
    %1 = vector.shape_cast %0 : vector<1x16x256xf32> to vector<16x256xf32>
    %c0_2 = arith.constant 0 : index
    %c0_3 = arith.constant 0 : index
    %2 = vector.load %arg6[%c0_2, %c0_3] : memref<2x16xbf16, #tpu.memory_space<vmem>>, vector<2x16xbf16>
    %3 = arith.truncf %1 : vector<16x256xf32> to vector<16x256xbf16>
    %cst = arith.constant dense<0.000000e+00> : vector<2x256xf32>
    %4 = tpu.matmul %2, %3, %cst {dimension_numbers = #tpu.dot_dimension_numbers<[1], [0], [0], [1], [0, 0, 1, 1], [], []>} : vector<2x16xbf16>, vector<16x256xbf16>, vector<2x256xf32> -> vector<2x256xf32>
    %c0_4 = arith.constant 0 : index
    %c0_5 = arith.constant 0 : index
    %c0_6 = arith.constant 0 : index
    %5 = vector.load %arg4[%c0_4, %c0_5, %c0_6] : memref<1x64x2xbf16, #tpu.memory_space<vmem>>, vector<1x64x2xbf16>
    %6 = vector.shape_cast %5 : vector<1x64x2xbf16> to vector<64x2xbf16>
    %7 = arith.truncf %4 : vector<2x256xf32> to vector<2x256xbf16>
    %cst_7 = arith.constant dense<0.000000e+00> : vector<64x256xf32>
    %8 = tpu.matmul %6, %7, %cst_7 {dimension_numbers = #tpu.dot_dimension_numbers<[1], [0], [0], [1], [0, 0, 1, 1], [], []>} : vector<64x2xbf16>, vector<2x256xbf16>, vector<64x256xf32> -> vector<64x256xf32>
    %cst_8 = arith.constant dense<0xFF800000> : vector<256xf32>
    %9 = vector.multi_reduction <maximumf>, %8, %cst_8 [0] : vector<64x256xf32> to vector<256xf32>
    %10 = vector.shape_cast %9 : vector<256xf32> to vector<1x256xf32>
    %11 = vector.broadcast %10 : vector<1x256xf32> to vector<64x256xf32>
    %12 = arith.subf %8, %11 : vector<64x256xf32>
    %13 = math.exp %12 : vector<64x256xf32>
    %cst_9 = arith.constant dense<0.000000e+00> : vector<256xf32>
    %14 = vector.multi_reduction <add>, %13, %cst_9 [0] : vector<64x256xf32> to vector<256xf32>
    %15 = vector.shape_cast %14 : vector<256xf32> to vector<1x256xf32>
    %16 = arith.truncf %13 : vector<64x256xf32> to vector<64x256xbf16>
    %c0_10 = arith.constant 0 : index
    %c0_11 = arith.constant 0 : index
    %c0_12 = arith.constant 0 : index
    %17 = vector.load %arg5[%c0_10, %c0_11, %c0_12] : memref<1x8x64xbf16, #tpu.memory_space<vmem>>, vector<1x8x64xbf16>
    %18 = vector.shape_cast %17 : vector<1x8x64xbf16> to vector<8x64xbf16>
    %cst_13 = arith.constant dense<0.000000e+00> : vector<8x256xf32>
    %19 = tpu.matmul %18, %16, %cst_13 {dimension_numbers = #tpu.dot_dimension_numbers<[1], [0], [0], [1], [0, 0, 1, 1], [], []>} : vector<8x64xbf16>, vector<64x256xbf16>, vector<8x256xf32> -> vector<8x256xf32>
    %20 = tpu.reciprocal %15 : vector<1x256xf32> -> vector<1x256xf32>
    %21 = vector.broadcast %20 : vector<1x256xf32> to vector<8x256xf32>
    %22 = arith.mulf %19, %21 : vector<8x256xf32>
    %c0_14 = arith.constant 0 : index
    %c0_15 = arith.constant 0 : index
    %23 = vector.load %arg7[%c0_14, %c0_15] : memref<16x8xbf16, #tpu.memory_space<vmem>>, vector<16x8xbf16>
    %24 = arith.truncf %22 : vector<8x256xf32> to vector<8x256xbf16>
    %cst_16 = arith.constant dense<0.000000e+00> : vector<16x256xf32>
    %25 = tpu.matmul %23, %24, %cst_16 {dimension_numbers = #tpu.dot_dimension_numbers<[1], [0], [0], [1], [0, 0, 1, 1], [], []>} : vector<16x8xbf16>, vector<8x256xbf16>, vector<16x256xf32> -> vector<16x256xf32>
    %c0_17 = arith.constant 0 : index
    %26 = memref.load %arg2[%c0_17] : memref<1xf32, #tpu.memory_space<smem>>
    %27 = vector.broadcast %26 : f32 to vector<16x256xf32>
    %28 = arith.mulf %27, %25 : vector<16x256xf32>
    %29 = arith.addf %28, %1 : vector<16x256xf32>
    %c0_18 = arith.constant 0 : index
    %c0_19 = arith.constant 0 : index
    %c0_20 = arith.constant 0 : index
    %30 = vector.load %arg8[%c0_18, %c0_19, %c0_20] : memref<1x16x256xf32, #tpu.memory_space<vmem>>, vector<1x16x256xf32>
    %31 = vector.shape_cast %30 : vector<1x16x256xf32> to vector<16x256xf32>
    %32 = vector.shape_cast %29 : vector<16x256xf32> to vector<1x16x256xf32>
    tpu.vector_store %arg8[%c0_18, %c0_19, %c0_20], %32 {strides = array<i32>} : memref<1x16x256xf32, #tpu.memory_space<vmem>>, vector<1x16x256xf32>,
    return
  }
  func.func @transform_0(%arg0: i32, %arg1: i32) -> i32 {
    %c0_i32 = arith.constant 0 : i32
    %c0_i32_0 = arith.constant 0 : i32
    return %c0_i32 : i32
  }
  func.func @transform_1(%arg0: i32, %arg1: i32) -> (i32, i32, i32) {
    %c0_i32 = arith.constant 0 : i32
    %c0_i32_0 = arith.constant 0 : i32
    return %arg0, %c0_i32, %arg1 : i32, i32, i32
  }
  func.func @transform_2(%arg0: i32, %arg1: i32) -> (i32, i32, i32) {
    %c0_i32 = arith.constant 0 : i32
    %c0_i32_0 = arith.constant 0 : i32
    %c0_i32_1 = arith.constant 0 : i32
    return %arg0, %c0_i32, %c0_i32_0 : i32, i32, i32
  }
  func.func @transform_3(%arg0: i32, %arg1: i32) -> (i32, i32, i32) {
    %c0_i32 = arith.constant 0 : i32
    %c0_i32_0 = arith.constant 0 : i32
    %c0_i32_1 = arith.constant 0 : i32
    return %arg0, %c0_i32, %c0_i32_0 : i32, i32, i32
  }
  func.func @transform_4(%arg0: i32, %arg1: i32) -> (i32, i32) {
    %c0_i32 = arith.constant 0 : i32
    %c0_i32_0 = arith.constant 0 : i32
    %c0_i32_1 = arith.constant 0 : i32
    return %c0_i32, %c0_i32_0 : i32, i32
  }
  func.func @transform_5(%arg0: i32, %arg1: i32) -> (i32, i32) {
    %c0_i32 = arith.constant 0 : i32
    %c0_i32_0 = arith.constant 0 : i32
    %c0_i32_1 = arith.constant 0 : i32
    return %c0_i32, %c0_i32_0 : i32, i32
  }
  func.func @transform_6(%arg0: i32, %arg1: i32) -> (i32, i32, i32) {
    %c0_i32 = arith.constant 0 : i32
    %c0_i32_0 = arith.constant 0 : i32
    return %arg0, %c0_i32, %arg1 : i32, i32, i32
  }
}

</mosaic_0001>

<llo_original>
// kernel: tpu_custom_call.1
$region0: #{tpu_custom_call.1}
  #allocation0 [shape = 'u32[]', space=smem, size = 0x4, offset = 0x4, fixed_abs, tag = 'smem constant byte address 0x4 - core index']
  #allocation1 [shape = 'u32[144,128]{1,0:T(1,128)}', space=vmem, size = 0x12000, scoped, tag = 'internal scratch']
  #allocation2 [shape = 'f32[1]{0:T(128)S(6)}', space=smem, size = 0x200, scoped, tag = 'scoped memory for tpu_custom_call.1']
  %s0 = inlined_call_operand.<no memory space> [shape: f32[1], index: 0, kind: input, shape index: {}]
  %s1 = inlined_call_operand.vmem [shape: f32[2,16,256], index: 1, kind: input, shape index: {}]
  %s2 = inlined_call_operand.vmem [shape: bf16[2,64,2], index: 2, kind: input, shape index: {}]
  %s3 = inlined_call_operand.vmem [shape: bf16[2,8,64], index: 3, kind: input, shape index: {}]
  %s4 = inlined_call_operand.vmem [shape: bf16[2,16], index: 4, kind: input, shape index: {}]
  %s5 = inlined_call_operand.vmem [shape: bf16[16,8], index: 5, kind: input, shape index: {}]
  %s6 = inlined_call_operand.hbm [shape: f32[2,16,256], index: 6, kind: output, shape index: {}]
  %s7 = sld [smem:[#allocation0]]
  $region57: #{tpu_custom_call.1} parent=0
    _
  %s9 = ssub.s32 1, %s7
  %s10 = scalar_select 0, %s9, %s7
  %11 = sst [smem:[#allocation2]] %s0
  $region1: #{tpu_custom_call.1} parent=0
    #allocation3 [shape = 'u8[32768]{0}', space=vmem, size = 0x8000, scoped, tag = 'output window, operand 0']
    #allocation4 [shape = 's32[2]{0}', space=sflag, size = 0x8, scoped, tag = 'scoped memory for tpu_custom_call.1']
    %12 = vsyncpa [#allocation4], 0
    %s13 = scalar_lea.sflag [#allocation4], 1
    %14 = vsyncpa %s13, 0
    loop: start=0, step=1, limit=4
    $region2: #{tpu_custom_call.1} parent=1 // loop_pre_header
      _
    $region3: #{tpu_custom_call.1} parent=1 // loop_header
      %s16 = sphi 0, %s20
      %p17 = scmp.ge.s32.totalorder %s16, 4
      %s23 = sphi 0, %s35
      %s24 = sphi 0, %s31
      %s25 = sphi 0, %s23
      %s26 = sphi 0, %s24
      %s27 = sphi 0, %s25
      %s28 = sphi 0, %s26
      %s36 = sphi 0, %s36
      %s38 = sphi 0, %s36
      %s39 = sphi 0, %s38
      %s53 = sphi 0, %s39
      %s61 = sphi 0, %s63
      %s64 = sphi 0, %s61
      %s65 = sphi 0, %s64
      %s81 = sphi 0, %s65
      %s87 = sphi 0, %s89
      %s90 = sphi 0, %s87
      %s91 = sphi 0, %s90
      %s107 = sphi 0, %s91
      %s113 = sphi 0, %s115
      %s116 = sphi 0, %s113
      %s117 = sphi 0, %s116
      %s133 = sphi 0, %s117
      %s137 = sphi 0, %s137
      %s139 = sphi 0, %s137
      %s140 = sphi 0, %s139
      %s154 = sphi 0, %s140
      %s158 = sphi 0, %s158
      %s160 = sphi 0, %s158
      %s161 = sphi 0, %s160
      %s175 = sphi 0, %s161
      %s183 = sphi 0, %s185
      %s186 = sphi 0, %s183
      %s187 = sphi 0, %s186
      %s203 = sphi 0, %s187
    $region4: #{tpu_custom_call.1} parent=1 // loop_header_branch
      %19 = sbr.rel (%p17) target = $region8
    $region5: #{tpu_custom_call.1} parent=1 // loop_body
      %s21 = ssub.s32 %s16, 1
      %s22 = ssub.s32 %s16, 2
      %s29 = sadd.s32 1, %s24
      %p30 = scmp.ge.s32.totalorder %s29, 1
      %s31 = scalar_select %p30, 0, %s29
      %s32 = sadd.s32 1, %s23
      %s33 = scalar_select %p30, %s32, %s23
      %p34 = scmp.ge.s32.totalorder %s33, 2
      %s35 = scalar_select %p34, 0, %s33
      %s37 = sadd.s32 %s36, 1
      %p40 = scmp.eq.s32.totalorder %s16, 1
      %p41 = scmp.ne.s32.totalorder %s36, %s38
      %p42 = scmp.eq.s32.totalorder %s16, 0
      %p43 = por %p41, %p42
      %p44 = scmp.ne.s32.totalorder %s36, %s38
      %p45 = scmp.eq.s32.totalorder %s21, 1
      %p46 = por %p44, %p45
      %p47 = scmp.ne.s32.totalorder %s38, %s39
      %p48 = scmp.eq.s32.totalorder %s21, 0
      %p49 = por %p47, %p48
      %p50 = scmp.ne.s32.totalorder %s38, %s39
      %p51 = scmp.eq.s32.totalorder %s22, 1
      %p52 = por %p50, %p51
      %p54 = scmp.ne.s32.totalorder %s39, %s53
      %p55 = scmp.eq.s32.totalorder %s22, 0
      %p56 = por %p54, %p55
      %s57 = ssub.s32 %s23, %s35
      %s58 = ssub.s32 %s24, %s31
      %s59 = sor.u32 %s57, %s58
      %p60 = scmp.eq.s32.totalorder %s59, 0
      %s62 = sadd.s32 %s61, 1
      %s63 = scalar_select %p60, %s61, %s62
      %p66 = pneg %p60
      %p67 = scmp.eq.s32.totalorder %s16, 1
      %p68 = por %p66, %p67
      %p69 = scmp.ne.s32.totalorder %s61, %s64
      %p70 = scmp.eq.s32.totalorder %s16, 0
      %p71 = por %p69, %p70
      %p72 = scmp.ne.s32.totalorder %s61, %s64
      %p73 = scmp.eq.s32.totalorder %s21, 1
      %p74 = por %p72, %p73
      %p75 = scmp.ne.s32.totalorder %s64, %s65
      %p76 = scmp.eq.s32.totalorder %s21, 0
      %p77 = por %p75, %p76
      %p78 = scmp.ne.s32.totalorder %s64, %s65
      %p79 = scmp.eq.s32.totalorder %s22, 1
      %p80 = por %p78, %p79
      %p82 = scmp.ne.s32.totalorder %s65, %s81
      %p83 = scmp.eq.s32.totalorder %s22, 0
      %p84 = por %p82, %p83
      %s85 = ssub.s32 %s23, %s35
      %p86 = scmp.eq.s32.totalorder %s85, 0
      %s88 = sadd.s32 %s87, 1
      %s89 = scalar_select %p86, %s87, %s88
      %p92 = pneg %p86
      %p93 = scmp.eq.s32.totalorder %s16, 1
      %p94 = por %p92, %p93
      %p95 = scmp.ne.s32.totalorder %s87, %s90
      %p96 = scmp.eq.s32.totalorder %s16, 0
      %p97 = por %p95, %p96
      %p98 = scmp.ne.s32.totalorder %s87, %s90
      %p99 = scmp.eq.s32.totalorder %s21, 1
      %p100 = por %p98, %p99
      %p101 = scmp.ne.s32.totalorder %s90, %s91
      %p102 = scmp.eq.s32.totalorder %s21, 0
      %p103 = por %p101, %p102
      %p104 = scmp.ne.s32.totalorder %s90, %s91
      %p105 = scmp.eq.s32.totalorder %s22, 1
      %p106 = por %p104, %p105
      %p108 = scmp.ne.s32.totalorder %s91, %s107
      %p109 = scmp.eq.s32.totalorder %s22, 0
      %p110 = por %p108, %p109
      %s111 = ssub.s32 %s23, %s35
      %p112 = scmp.eq.s32.totalorder %s111, 0
      %s114 = sadd.s32 %s113, 1
      %s115 = scalar_select %p112, %s113, %s114
      %p118 = pneg %p112
      %p119 = scmp.eq.s32.totalorder %s16, 1
      %p120 = por %p118, %p119
      %p121 = scmp.ne.s32.totalorder %s113, %s116
      %p122 = scmp.eq.s32.totalorder %s16, 0
      %p123 = por %p121, %p122
      %p124 = scmp.ne.s32.totalorder %s113, %s116
      %p125 = scmp.eq.s32.totalorder %s21, 1
      %p126 = por %p124, %p125
      %p127 = scmp.ne.s32.totalorder %s116, %s117
      %p128 = scmp.eq.s32.totalorder %s21, 0
      %p129 = por %p127, %p128
      %p130 = scmp.ne.s32.totalorder %s116, %s117
      %p131 = scmp.eq.s32.totalorder %s22, 1
      %p132 = por %p130, %p131
      %p134 = scmp.ne.s32.totalorder %s117, %s133
      %p135 = scmp.eq.s32.totalorder %s22, 0
      %p136 = por %p134, %p135
      %s138 = sadd.s32 %s137, 1
      %p141 = scmp.eq.s32.totalorder %s16, 1
      %p142 = scmp.ne.s32.totalorder %s137, %s139
      %p143 = scmp.eq.s32.totalorder %s16, 0
      %p144 = por %p142, %p143
      %p145 = scmp.ne.s32.totalorder %s137, %s139
      %p146 = scmp.eq.s32.totalorder %s21, 1
      %p147 = por %p145, %p146
      %p148 = scmp.ne.s32.totalorder %s139, %s140
      %p149 = scmp.eq.s32.totalorder %s21, 0
      %p150 = por %p148, %p149
      %p151 = scmp.ne.s32.totalorder %s139, %s140
      %p152 = scmp.eq.s32.totalorder %s22, 1
      %p153 = por %p151, %p152
      %p155 = scmp.ne.s32.totalorder %s140, %s154
      %p156 = scmp.eq.s32.totalorder %s22, 0
      %p157 = por %p155, %p156
      %s159 = sadd.s32 %s158, 1
      %p162 = scmp.eq.s32.totalorder %s16, 1
      %p163 = scmp.ne.s32.totalorder %s158, %s160
      %p164 = scmp.eq.s32.totalorder %s16, 0
      %p165 = por %p163, %p164
      %p166 = scmp.ne.s32.totalorder %s158, %s160
      %p167 = scmp.eq.s32.totalorder %s21, 1
      %p168 = por %p166, %p167
      %p169 = scmp.ne.s32.totalorder %s160, %s161
      %p170 = scmp.eq.s32.totalorder %s21, 0
      %p171 = por %p169, %p170
      %p172 = scmp.ne.s32.totalorder %s160, %s161
      %p173 = scmp.eq.s32.totalorder %s22, 1
      %p174 = por %p172, %p173
      %p176 = scmp.ne.s32.totalorder %s161, %s175
      %p177 = scmp.eq.s32.totalorder %s22, 0
      %p178 = por %p176, %p177
      %s179 = ssub.s32 %s23, %s35
      %s180 = ssub.s32 %s24, %s31
      %s181 = sor.u32 %s179, %s180
      %p182 = scmp.eq.s32.totalorder %s181, 0
      %s184 = sadd.s32 %s183, 1
      %s185 = scalar_select %p182, %s183, %s184
      %p188 = pneg %p182
      %p189 = scmp.eq.s32.totalorder %s16, 1
      %p190 = por %p188, %p189
      %p191 = scmp.ne.s32.totalorder %s183, %s186
      %p192 = scmp.eq.s32.totalorder %s16, 0
      %p193 = por %p191, %p192
      %p194 = scmp.ne.s32.totalorder %s183, %s186
      %p195 = scmp.eq.s32.totalorder %s21, 1
      %p196 = por %p194, %p195
      %p197 = scmp.ne.s32.totalorder %s186, %s187
      %p198 = scmp.eq.s32.totalorder %s21, 0
      %p199 = por %p197, %p198
      %p200 = scmp.ne.s32.totalorder %s186, %s187
      %p201 = scmp.eq.s32.totalorder %s22, 1
      %p202 = por %p200, %p201
      %p204 = scmp.ne.s32.totalorder %s187, %s203
      %p205 = scmp.eq.s32.totalorder %s22, 0
      %p206 = por %p204, %p205
      %p207 = scmp.le.s32.totalorder 1, %s16
      %p208 = scmp.lt.s32.totalorder %s16, 3
      %p209 = pnand %p207, %p208
      %p210 = pneg %p209
      // Predicated region
      $region9: #{tpu_custom_call.1} parent=5 // pred_check
        _
      $region10: #{tpu_custom_call.1} parent=5 // pred_check_branch
        %212 = sbr.rel (%p209) target = $region12
      $region11: #{tpu_custom_call.1} parent=5 // pred_region
        %s213 = ssub.s32 %s16, 1
        // Predicated region
        $region13: #{tpu_custom_call.1} parent=11 // pred_check
          %p214 = pneg %p49
        $region14: #{tpu_custom_call.1} parent=11 // pred_check_branch
          %216 = sbr.rel (%p214) target = $region16
        $region15: #{tpu_custom_call.1} parent=11 // pred_region
          _
        $region16: #{tpu_custom_call.1} parent=11 // pred_fallthru
          _
        // Predicated region
        $region17: #{tpu_custom_call.1} parent=11 // pred_check
          %p217 = pneg %p103
        $region18: #{tpu_custom_call.1} parent=11 // pred_check_branch
          %219 = sbr.rel (%p217) target = $region20
        $region19: #{tpu_custom_call.1} parent=11 // pred_region
          %p220 = scmp.lt.s32.totalorder %s25, 1
          %s221 = scalar_select %p220, %s25, 1
          %s222 = smul.addr %s221, 8
          %s223 = smul.addr %s222, 4
          %s224 = scalar_lea.vmem %s2, %s223
        $region20: #{tpu_custom_call.1} parent=11 // pred_fallthru
          _
        // Predicated region
        $region21: #{tpu_custom_call.1} parent=11 // pred_check
          %p225 = pneg %p129
        $region22: #{tpu_custom_call.1} parent=11 // pred_check_branch
          %227 = sbr.rel (%p225) target = $region24
        $region23: #{tpu_custom_call.1} parent=11 // pred_region
          %p228 = scmp.lt.s32.totalorder %s25, 1
          %s229 = scalar_select %p228, %s25, 1
          %s230 = smul.addr %s229, 4
          %s231 = scalar_lea.vmem %s3, %s230
        $region24: #{tpu_custom_call.1} parent=11 // pred_fallthru
          _
        // Predicated region
        $region25: #{tpu_custom_call.1} parent=11 // pred_check
          %p232 = pneg %p150
        $region26: #{tpu_custom_call.1} parent=11 // pred_check_branch
          %234 = sbr.rel (%p232) target = $region28
        $region27: #{tpu_custom_call.1} parent=11 // pred_region
          _
        $region28: #{tpu_custom_call.1} parent=11 // pred_fallthru
          _
        // Predicated region
        $region29: #{tpu_custom_call.1} parent=11 // pred_check
          %p235 = pneg %p171
        $region30: #{tpu_custom_call.1} parent=11 // pred_check_branch
          %237 = sbr.rel (%p235) target = $region32
        $region31: #{tpu_custom_call.1} parent=11 // pred_region
          _
        $region32: #{tpu_custom_call.1} parent=11 // pred_fallthru
          _
      $region12: #{tpu_custom_call.1} parent=5 // pred_fallthru
        _
      %p238 = scmp.lt.s32.totalorder %s16, 2
      // Predicated region
      $region33: #{tpu_custom_call.1} parent=5 // pred_check
        %p239 = pneg %p238
      $region34: #{tpu_custom_call.1} parent=5 // pred_check_branch
        %241 = sbr.rel (%p239) target = $region36
      $region35: #{tpu_custom_call.1} parent=5 // pred_region
        // Predicated region
        $region37: #{tpu_custom_call.1} parent=35 // pred_check
          %p242 = pneg %p71
        $region38: #{tpu_custom_call.1} parent=35 // pred_check_branch
          %244 = sbr.rel (%p242) target = $region40
        $region39: #{tpu_custom_call.1} parent=35 // pred_region
          %s245 = smul.u32 2, %s24
          %p246 = scmp.lt.s32.totalorder %s23, 1
          %s247 = scalar_select %p246, %s23, 1
          %p248 = scmp.lt.s32.totalorder %s245, 1
          %s249 = scalar_select %p248, %s245, 1
          %s250 = smul.addr %s247, 4
          %s251 = sadd.s32 %s249, %s250
          %s252 = smul.addr %s251, 8
          %s253 = scalar_lea.vmem %s1, %s252
          %s254 = smul.u32 2, %s24
        $region40: #{tpu_custom_call.1} parent=35 // pred_fallthru
          _
      $region36: #{tpu_custom_call.1} parent=5 // pred_fallthru
        _
      %p255 = scmp.le.s32.totalorder 1, %s16
      %p256 = scmp.lt.s32.totalorder %s16, 3
      %p257 = pnand %p255, %p256
      %p258 = pneg %p257
      // Predicated region
      $region41: #{tpu_custom_call.1} parent=5 // pred_check
        _
      $region42: #{tpu_custom_call.1} parent=5 // pred_check_branch
        %260 = sbr.rel (%p257) target = $region44
      $region43: #{tpu_custom_call.1} parent=5 // pred_region
        %s261 = ssub.s32 %s16, 1
        %p262 = pneg %p49
        %p263 = pneg %p46
        %s264 = smul.u32 2, %s26
        %p265 = scmp.lt.s32.totalorder %s25, 1
        %s266 = scalar_select %p265, %s25, 1
        %p267 = scmp.lt.s32.totalorder %s264, 1
        %s268 = scalar_select %p267, %s264, 1
        %s269 = smul.addr %s266, 4
        %s270 = sadd.s32 %s268, %s269
        %s271 = smul.addr %s270, 8
        %s272 = scalar_lea.vmem %s1, %s271
        %p273 = pneg %p77
        %p274 = pneg %p74
        %p275 = scmp.lt.s32.totalorder %s25, 1
        %s276 = scalar_select %p275, %s25, 1
        %s277 = smul.addr %s276, 8
        %s278 = smul.addr %s277, 4
        %s279 = scalar_lea.vmem %s2, %s278
        %p280 = pneg %p103
        %p281 = pneg %p100
        %p282 = scmp.lt.s32.totalorder %s25, 1
        %s283 = scalar_select %p282, %s25, 1
        %s284 = smul.addr %s283, 4
        %s285 = scalar_lea.vmem %s3, %s284
        %p286 = pneg %p129
        %p287 = pneg %p126
        %p288 = pneg %p150
        %p289 = pneg %p147
        %p290 = pneg %p171
        %p291 = pneg %p168
        %p292 = pneg %p199
        %p293 = pneg %p196
        %s294 = sand.u32 %s186, 1
        %s295 = scalar_lea.sflag [#allocation4], %s294
        %s296 = sand.u32 %s186, 1
        %s297 = smul.addr %s296, 32
        %s298 = scalar_lea.vmem [#allocation3], %s297
        %s299 = smul.u32 2, %s26
        %p300 = scmp.lt.s32.totalorder %s25, 1
        %s301 = scalar_select %p300, %s25, 1
        %p302 = scmp.lt.s32.totalorder %s299, 1
        %s303 = scalar_select %p302, %s299, 1
        %s304 = smul.addr %s301, 4
        %s305 = sadd.s32 %s303, %s304
        %s306 = smul.addr %s305, 8
        %s307 = scalar_lea.vmem %s1, %s306
        %s308 = smul.u32 2, %s26
        %p309 = scmp.lt.s32.totalorder %s25, 1
        %s310 = scalar_select %p309, %s25, 1
        %s311 = smul.addr %s310, 8
        %s312 = smul.addr %s311, 4
        %s313 = scalar_lea.vmem %s2, %s312
        %p314 = scmp.lt.s32.totalorder %s25, 1
        %s315 = scalar_select %p314, %s25, 1
        %s316 = smul.addr %s315, 4
        %s317 = scalar_lea.vmem %s3, %s316
        %s318 = smul.u32 2, %s26
        %v320 = vld [vmem:[%s307] sm:$0xff]
        %v321 = vld [vmem:[%s307 + $0x8] sm:$0xff]
        %v322 = vld [vmem:[%s307 + $0x10] sm:$0xff]
        %v323 = vld [vmem:[%s307 + $0x18] sm:$0xff]
        %v324 = vld [vmem:[%s4] sm:$0x1]
        %v325 = vpack.c.bf16 %v322, %v320
        %v326 = vpack.c.bf16 %v323, %v321
        %vm327 = vcmask 130048
        %v329 = vsel %vm327, %v324, 0
        %331 = vmatprep.subr.bf16.mxu0 %v326
        %332 = vmatpush1.bf16.msra.mxu0 %v325
        %333 = vmatprep.subr.bf16.mxu0 0
        %334 = vmatpush1.bf16.msra.mxu0 0
        %335 = vmatprep.subr.bf16.mxu0 0
        %336 = vmatpush1.bf16.msra.mxu0 0
        %337 = vmatprep.subr.bf16.mxu0 0
        %338 = vmatpush1.bf16.msra.mxu0 0
        %339 = vmatprep.subr.bf16.mxu0 0
        %340 = vmatpush1.bf16.msra.mxu0 0
        %341 = vmatprep.subr.bf16.mxu0 0
        %342 = vmatpush1.bf16.msra.mxu0 0
        %343 = vmatprep.subr.bf16.mxu0 0
        %344 = vmatpush1.bf16.msra.mxu0 0
        %345 = vmatprep.subr.bf16.mxu0 0
        %346 = vmatpush1.bf16.msra.mxu0 0
        %347 = vmatprep.subr.bf16.mxu0 0
        %348 = vmatpush1.bf16.msra.mxu0 0
        %349 = vmatprep.subr.bf16.mxu0 0
        %350 = vmatpush1.bf16.msra.mxu0 0
        %351 = vmatprep.subr.bf16.mxu0 0
        %352 = vmatpush1.bf16.msra.mxu0 0
        %353 = vmatprep.subr.bf16.mxu0 0
        %354 = vmatpush1.bf16.msra.mxu0 0
        %355 = vmatprep.subr.bf16.mxu0 0
        %356 = vmatpush1.bf16.msra.mxu0 0
        %357 = vmatprep.subr.bf16.mxu0 0
        %358 = vmatpush1.bf16.msra.mxu0 0
        %359 = vmatprep.subr.bf16.mxu0 0
        %360 = vmatpush1.bf16.msra.mxu0 0
        %361 = vmatprep.subr.bf16.mxu0 0
        %362 = vmatpush1.bf16.msra.mxu0 0
        %363 = vmatprep.mubr.bf16.mxu0 0
        %364 = vmatmul.mubr.bf16.gmra.mrb[0].mxu0 %v329
        %v365 = vpop.f32.mrb[0].mxu0
        %v366 = vadd.f32 0.0, %v365
        %v367 = vpop.f32.mrb[0].mxu0
        %v368 = vadd.f32 0.0, %v367
        %v369 = vpop.f32.mrb[0].mxu0
        %v370 = vpop.f32.mrb[0].mxu0
        %371 = vdwg.mxu0
        %v372 = vld [vmem:[%s313] sm:$0xf]
        %v373 = vld [vmem:[%s313 + $0x4] sm:$0xf]
        %v374 = vld [vmem:[%s313 + $0x8] sm:$0xf]
        %v375 = vld [vmem:[%s313 + $0xc] sm:$0xf]
        %v376 = vld [vmem:[%s313 + $0x10] sm:$0xf]
        %v377 = vld [vmem:[%s313 + $0x14] sm:$0xf]
        %v378 = vld [vmem:[%s313 + $0x18] sm:$0xf]
        %v379 = vld [vmem:[%s313 + $0x1c] sm:$0xf]
        %v380 = vpack.c.bf16 %v366, %v366
        %v381 = vpack.c.bf16 %v368, %v368
        %v390 = vunpack.c.l.b16 %v372
        %v391 = vunpack.c.l.b16 %v373
        %v392 = vunpack.c.l.b16 %v374
        %v393 = vunpack.c.l.b16 %v375
        %v394 = vunpack.c.l.b16 %v376
        %v395 = vunpack.c.l.b16 %v377
        %v396 = vunpack.c.l.b16 %v378
        %v397 = vunpack.c.l.b16 %v379
        %v398 = vpack.c.b16 %v391, %v390
        %v399 = vpack.c.b16 %v393, %v392
        %v400 = vpack.c.b16 %v395, %v394
        %v401 = vpack.c.b16 %v397, %v396
        %vm402 = vcmask 15360
        %v404 = vsel %vm402, %v398, 0
        %v407 = vsel %vm402, %v399, 0
        %v410 = vsel %vm402, %v400, 0
        %v413 = vsel %vm402, %v401, 0
        %vm415 = vcmask 1040384
        %v417 = vsel %vm415, %v380, 0
        %v420 = vsel %vm415, %v381, 0
        %422 = vmatprep.subr.bf16.mxu0 %v420
        %423 = vmatpush1.bf16.msra.mxu0 %v417
        %424 = vmatprep.subr.bf16.mxu0 0
        %425 = vmatpush1.bf16.msra.mxu0 0
        %426 = vmatprep.subr.bf16.mxu0 0
        %427 = vmatpush1.bf16.msra.mxu0 0
        %428 = vmatprep.subr.bf16.mxu0 0
        %429 = vmatpush1.bf16.msra.mxu0 0
        %430 = vmatprep.subr.bf16.mxu0 0
        %431 = vmatpush1.bf16.msra.mxu0 0
        %432 = vmatprep.subr.bf16.mxu0 0
        %433 = vmatpush1.bf16.msra.mxu0 0
        %434 = vmatprep.subr.bf16.mxu0 0
        %435 = vmatpush1.bf16.msra.mxu0 0
        %436 = vmatprep.subr.bf16.mxu0 0
        %437 = vmatpush1.bf16.msra.mxu0 0
        %438 = vmatprep.subr.bf16.mxu0 0
        %439 = vmatpush1.bf16.msra.mxu0 0
        %440 = vmatprep.subr.bf16.mxu0 0
        %441 = vmatpush1.bf16.msra.mxu0 0
        %442 = vmatprep.subr.bf16.mxu0 0
        %443 = vmatpush1.bf16.msra.mxu0 0
        %444 = vmatprep.subr.bf16.mxu0 0
        %445 = vmatpush1.bf16.msra.mxu0 0
        %446 = vmatprep.subr.bf16.mxu0 0
        %447 = vmatpush1.bf16.msra.mxu0 0
        %448 = vmatprep.subr.bf16.mxu0 0
        %449 = vmatpush1.bf16.msra.mxu0 0
        %450 = vmatprep.subr.bf16.mxu0 0
        %451 = vmatpush1.bf16.msra.mxu0 0
        %452 = vmatprep.subr.bf16.mxu0 0
        %453 = vmatpush1.bf16.msra.mxu0 0
        %454 = vmatprep.mubr.bf16.mxu0 0
        %455 = vmatmul.mubr.bf16.gmra.mrb[0].mxu0 %v404
        %v456 = vpop.f32.mrb[0].mxu0
        %v457 = vadd.f32 0.0, %v456
        %v458 = vpop.f32.mrb[0].mxu0
        %v459 = vadd.f32 0.0, %v458
        %v460 = vpop.f32.mrb[0].mxu0
        %v461 = vadd.f32 0.0, %v460
        %v462 = vpop.f32.mrb[0].mxu0
        %v463 = vadd.f32 0.0, %v462
        %464 = vmatprep.mubr.bf16.mxu0 0
        %465 = vmatmul.mubr.bf16.gmra.mrb[0].mxu0 %v407
        %v466 = vpop.f32.mrb[0].mxu0
        %v467 = vadd.f32 0.0, %v466
        %v468 = vpop.f32.mrb[0].mxu0
        %v469 = vadd.f32 0.0, %v468
        %v470 = vpop.f32.mrb[0].mxu0
        %v471 = vadd.f32 0.0, %v470
        %v472 = vpop.f32.mrb[0].mxu0
        %v473 = vadd.f32 0.0, %v472
        %474 = vmatprep.mubr.bf16.mxu0 0
        %475 = vmatmul.mubr.bf16.gmra.mrb[0].mxu0 %v410
        %v476 = vpop.f32.mrb[0].mxu0
        %v477 = vadd.f32 0.0, %v476
        %v478 = vpop.f32.mrb[0].mxu0
        %v479 = vadd.f32 0.0, %v478
        %v480 = vpop.f32.mrb[0].mxu0
        %v481 = vadd.f32 0.0, %v480
        %v482 = vpop.f32.mrb[0].mxu0
        %v483 = vadd.f32 0.0, %v482
        %484 = vmatprep.mubr.bf16.mxu0 0
        %485 = vmatmul.mubr.bf16.gmra.mrb[0].mxu0 %v413
        %v486 = vpop.f32.mrb[0].mxu0
        %v487 = vadd.f32 0.0, %v486
        %v488 = vpop.f32.mrb[0].mxu0
        %v489 = vadd.f32 0.0, %v488
        %v490 = vpop.f32.mrb[0].mxu0
        %v491 = vadd.f32 0.0, %v490
        %v492 = vpop.f32.mrb[0].mxu0
        %v493 = vadd.f32 0.0, %v492
        %494 = vdwg.mxu0
        %v495 = vmax.f32 %v457, %v467
        %v496 = vmax.f32 %v461, %v471
        %v497 = vmax.f32 %v495, %v477
        %v498 = vmax.f32 %v496, %v481
        %v499 = vmax.f32 %v497, %v487
        %v500 = vmax.f32 %v498, %v491
        %v501 = vmax.f32 %v499, %v500
        %v502 = vrot.slane %v501, 4
        %v503 = vmax.f32 %v501, %v502
        %v504 = vrot.slane %v503, 2
        %v505 = vmax.f32 %v503, %v504
        %v506 = vrot.slane %v505, 1
        %v507 = vmax.f32 %v505, %v506
        %v508 = vmax.f32 %v459, %v469
        %v509 = vmax.f32 %v463, %v473
        %v510 = vmax.f32 %v508, %v479
        %v511 = vmax.f32 %v509, %v483
        %v512 = vmax.f32 %v510, %v489
        %v513 = vmax.f32 %v511, %v493
        %v514 = vmax.f32 %v512, %v513
        %v515 = vrot.slane %v514, 4
        %v516 = vmax.f32 %v514, %v515
        %v517 = vrot.slane %v516, 2
        %v518 = vmax.f32 %v516, %v517
        %v519 = vrot.slane %v518, 1
        %v520 = vmax.f32 %v518, %v519
        %v521 = vsub.f32 %v457, %v507
        %v522 = vsub.f32 %v459, %v520
        %v523 = vsub.f32 %v461, %v507
        %v524 = vsub.f32 %v463, %v520
        %v525 = vsub.f32 %v467, %v507
        %v526 = vsub.f32 %v469, %v520
        %v527 = vsub.f32 %v471, %v507
        %v528 = vsub.f32 %v473, %v520
        %v529 = vsub.f32 %v477, %v507
        %v530 = vsub.f32 %v479, %v520
        %v531 = vsub.f32 %v481, %v507
        %v532 = vsub.f32 %v483, %v520
        %v533 = vsub.f32 %v487, %v507
        %v534 = vsub.f32 %v489, %v520
        %v535 = vsub.f32 %v491, %v507
        %v536 = vsub.f32 %v493, %v520
        %v537 = vmul.f32 %v521, 1.442695
        %v538 = vpow.pop %v537
        %v539 = vmul.f32 %v522, 1.442695
        %v540 = vpow.pop %v539
        %v541 = vmul.f32 %v523, 1.442695
        %v542 = vpow.pop %v541
        %v543 = vmul.f32 %v524, 1.442695
        %v544 = vpow.pop %v543
        %v545 = vmul.f32 %v525, 1.442695
        %v546 = vpow.pop %v545
        %v547 = vmul.f32 %v526, 1.442695
        %v548 = vpow.pop %v547
        %v549 = vmul.f32 %v527, 1.442695
        %v550 = vpow.pop %v549
        %v551 = vmul.f32 %v528, 1.442695
        %v552 = vpow.pop %v551
        %v553 = vmul.f32 %v529, 1.442695
        %v554 = vpow.pop %v553
        %v555 = vmul.f32 %v530, 1.442695
        %v556 = vpow.pop %v555
        %v557 = vmul.f32 %v531, 1.442695
        %v558 = vpow.pop %v557
        %v559 = vmul.f32 %v532, 1.442695
        %v560 = vpow.pop %v559
        %v561 = vmul.f32 %v533, 1.442695
        %v562 = vpow.pop %v561
        %v563 = vmul.f32 %v534, 1.442695
        %v564 = vpow.pop %v563
        %v565 = vmul.f32 %v535, 1.442695
        %v566 = vpow.pop %v565
        %v567 = vmul.f32 %v536, 1.442695
        %v568 = vpow.pop %v567
        %v569 = vadd.f32 %v538, %v542
        %v570 = vadd.f32 %v569, %v546
        %v571 = vadd.f32 %v570, %v550
        %v572 = vadd.f32 %v571, %v554
        %v573 = vadd.f32 %v572, %v558
        %v574 = vadd.f32 %v573, %v562
        %v575 = vadd.f32 %v574, %v566
        %v576 = vrot.slane %v575, 4
        %v577 = vadd.f32 %v575, %v576
        %v578 = vrot.slane %v577, 2
        %v579 = vadd.f32 %v577, %v578
        %v580 = vrot.slane %v579, 1
        %v581 = vadd.f32 %v579, %v580
        %v582 = vadd.f32 %v540, %v544
        %v583 = vadd.f32 %v582, %v548
        %v584 = vadd.f32 %v583, %v552
        %v585 = vadd.f32 %v584, %v556
        %v586 = vadd.f32 %v585, %v560
        %v587 = vadd.f32 %v586, %v564
        %v588 = vadd.f32 %v587, %v568
        %v589 = vrot.slane %v588, 4
        %v590 = vadd.f32 %v588, %v589
        %v591 = vrot.slane %v590, 2
        %v592 = vadd.f32 %v590, %v591
        %v593 = vrot.slane %v592, 1
        %v594 = vadd.f32 %v592, %v593
        %v595 = vpack.c.bf16 %v542, %v538
        %v596 = vpack.c.bf16 %v544, %v540
        %v597 = vpack.c.bf16 %v550, %v546
        %v598 = vpack.c.bf16 %v552, %v548
        %v599 = vpack.c.bf16 %v558, %v554
        %v600 = vpack.c.bf16 %v560, %v556
        %v601 = vpack.c.bf16 %v566, %v562
        %v602 = vpack.c.bf16 %v568, %v564
        %v603 = vld [vmem:[%s317] sm:$0xf]
        %vm604 = vcmask 523264
        %v606 = vsel %vm604, %v603, 0
        %608 = vmatprep.subr.bf16.mxu0 %v596
        %609 = vmatpush1.bf16.msra.mxu0 %v595
        %610 = vmatprep.subr.bf16.mxu0 %v598
        %611 = vmatpush1.bf16.msra.mxu0 %v597
        %612 = vmatprep.subr.bf16.mxu0 %v600
        %613 = vmatpush1.bf16.msra.mxu0 %v599
        %614 = vmatprep.subr.bf16.mxu0 %v602
        %615 = vmatpush1.bf16.msra.mxu0 %v601
        %616 = vmatprep.subr.bf16.mxu0 0
        %617 = vmatpush1.bf16.msra.mxu0 0
        %618 = vmatprep.subr.bf16.mxu0 0
        %619 = vmatpush1.bf16.msra.mxu0 0
        %620 = vmatprep.subr.bf16.mxu0 0
        %621 = vmatpush1.bf16.msra.mxu0 0
        %622 = vmatprep.subr.bf16.mxu0 0
        %623 = vmatpush1.bf16.msra.mxu0 0
        %624 = vmatprep.subr.bf16.mxu0 0
        %625 = vmatpush1.bf16.msra.mxu0 0
        %626 = vmatprep.subr.bf16.mxu0 0
        %627 = vmatpush1.bf16.msra.mxu0 0
        %628 = vmatprep.subr.bf16.mxu0 0
        %629 = vmatpush1.bf16.msra.mxu0 0
        %630 = vmatprep.subr.bf16.mxu0 0
        %631 = vmatpush1.bf16.msra.mxu0 0
        %632 = vmatprep.subr.bf16.mxu0 0
        %633 = vmatpush1.bf16.msra.mxu0 0
        %634 = vmatprep.subr.bf16.mxu0 0
        %635 = vmatpush1.bf16.msra.mxu0 0
        %636 = vmatprep.subr.bf16.mxu0 0
        %637 = vmatpush1.bf16.msra.mxu0 0
        %638 = vmatprep.subr.bf16.mxu0 0
        %639 = vmatpush1.bf16.msra.mxu0 0
        %640 = vmatprep.mubr.bf16.mxu0 0
        %641 = vmatmul.mubr.bf16.gmra.mrb[0].mxu0 %v606
        %v642 = vpop.f32.mrb[0].mxu0
        %v643 = vadd.f32 0.0, %v642
        %v644 = vpop.f32.mrb[0].mxu0
        %v645 = vadd.f32 0.0, %v644
        %v646 = vpop.f32.mrb[0].mxu0
        %v647 = vpop.f32.mrb[0].mxu0
        %648 = vdwg.mxu0
        %v649 = vrcp.pop %v581
        %v650 = vrcp.pop %v594
        %v651 = vmul.f32 %v643, %v649
        %v652 = vmul.f32 %v645, %v650
        %v653 = vld [vmem:[%s5] sm:$0xf]
        %v654 = vld [vmem:[%s5 + $0x4] sm:$0xf]
        %v655 = vpack.c.bf16 %v651, %v651
        %v656 = vpack.c.bf16 %v652, %v652
        %v659 = vunpack.c.l.b16 %v653
        %v660 = vunpack.c.l.b16 %v654
        %v661 = vpack.c.b16 %v660, %v659
        %vm662 = vcmask 64512
        %v664 = vsel %vm662, %v661, 0
        %vm666 = vcmask 1043456
        %v668 = vsel %vm666, %v655, 0
        %v671 = vsel %vm666, %v656, 0
        %673 = vmatprep.subr.bf16.mxu0 %v671
        %674 = vmatpush1.bf16.msra.mxu0 %v668
        %675 = vmatprep.subr.bf16.mxu0 0
        %676 = vmatpush1.bf16.msra.mxu0 0
        %677 = vmatprep.subr.bf16.mxu0 0
        %678 = vmatpush1.bf16.msra.mxu0 0
        %679 = vmatprep.subr.bf16.mxu0 0
        %680 = vmatpush1.bf16.msra.mxu0 0
        %681 = vmatprep.subr.bf16.mxu0 0
        %682 = vmatpush1.bf16.msra.mxu0 0
        %683 = vmatprep.subr.bf16.mxu0 0
        %684 = vmatpush1.bf16.msra.mxu0 0
        %685 = vmatprep.subr.bf16.mxu0 0
        %686 = vmatpush1.bf16.msra.mxu0 0
        %687 = vmatprep.subr.bf16.mxu0 0
        %688 = vmatpush1.bf16.msra.mxu0 0
        %689 = vmatprep.subr.bf16.mxu0 0
        %690 = vmatpush1.bf16.msra.mxu0 0
        %691 = vmatprep.subr.bf16.mxu0 0
        %692 = vmatpush1.bf16.msra.mxu0 0
        %693 = vmatprep.subr.bf16.mxu0 0
        %694 = vmatpush1.bf16.msra.mxu0 0
        %695 = vmatprep.subr.bf16.mxu0 0
        %696 = vmatpush1.bf16.msra.mxu0 0
        %697 = vmatprep.subr.bf16.mxu0 0
        %698 = vmatpush1.bf16.msra.mxu0 0
        %699 = vmatprep.subr.bf16.mxu0 0
        %700 = vmatpush1.bf16.msra.mxu0 0
        %701 = vmatprep.subr.bf16.mxu0 0
        %702 = vmatpush1.bf16.msra.mxu0 0
        %703 = vmatprep.subr.bf16.mxu0 0
        %704 = vmatpush1.bf16.msra.mxu0 0
        %705 = vmatprep.mubr.bf16.mxu0 0
        %706 = vmatmul.mubr.bf16.gmra.mrb[0].mxu0 %v664
        %v707 = vpop.f32.mrb[0].mxu0
        %v708 = vadd.f32 0.0, %v707
        %v709 = vpop.f32.mrb[0].mxu0
        %v710 = vadd.f32 0.0, %v709
        %v711 = vpop.f32.mrb[0].mxu0
        %v712 = vadd.f32 0.0, %v711
        %v713 = vpop.f32.mrb[0].mxu0
        %v714 = vadd.f32 0.0, %v713
        %715 = vdwg.mxu0
        %s716 = sld [smem:[#allocation2]]
        %v717 = vstv %s716
        %v718 = vmul.f32 %v717, %v708
        %v719 = vmul.f32 %v717, %v710
        %v720 = vmul.f32 %v717, %v712
        %v721 = vmul.f32 %v717, %v714
        %v722 = vadd.f32 %v718, %v320
        %v723 = vadd.f32 %v719, %v321
        %v724 = vadd.f32 %v720, %v322
        %v725 = vadd.f32 %v721, %v323
        %726 = vst [vmem:[%s298] sm:$0xff] %v722
        %727 = vst [vmem:[%s298 + $0x8] sm:$0xff] %v723
        %728 = vst [vmem:[%s298 + $0x10] sm:$0xff] %v724
        %729 = vst [vmem:[%s298 + $0x18] sm:$0xff] %v725
        %s730 = sand.u32 %s186, 1
        %s731 = scalar_lea.sflag [#allocation4], %s730
        %s732 = sand.u32 %s186, 1
        %s733 = smul.addr %s732, 32
        %s734 = scalar_lea.vmem [#allocation3], %s733
        // Predicated region
        $region45: #{tpu_custom_call.1} parent=43 // pred_check
          %p735 = pneg %p196
        $region46: #{tpu_custom_call.1} parent=43 // pred_check_branch
          %737 = sbr.rel (%p735) target = $region48
        $region47: #{tpu_custom_call.1} parent=43 // pred_region
          %s738 = smul.u32 2, %s26
          %s740 = ssub.s32 512, 512
          %741 = vsyncadd %s731, %s740
          %s742 = smul.addr %s25, 4
          %s743 = sadd.s32 %s738, %s742
          %s744 = smul.addr %s743, 128
          %s745 = scalar_lea.hbm %s6, %s744
          %s746 = sshll.u32 %s734, 4
          %s747 = int_to_ptr.vmem [resolvable:$true] %s746
          %752 = dma.vmem_to_hbm [thread:$0]  %s747, 512, %s745, %s731, 256, 256, 16
        $region48: #{tpu_custom_call.1} parent=43 // pred_fallthru
          _
      $region44: #{tpu_custom_call.1} parent=5 // pred_fallthru
        _
      %p753 = scmp.le.s32.totalorder 2, %s16
      // Predicated region
      $region49: #{tpu_custom_call.1} parent=5 // pred_check
        %p754 = pneg %p753
      $region50: #{tpu_custom_call.1} parent=5 // pred_check_branch
        %756 = sbr.rel (%p754) target = $region52
      $region51: #{tpu_custom_call.1} parent=5 // pred_region
        %s757 = ssub.s32 %s16, 2
        // Predicated region
        $region53: #{tpu_custom_call.1} parent=51 // pred_check
          %p758 = pneg %p202
        $region54: #{tpu_custom_call.1} parent=51 // pred_check_branch
          %760 = sbr.rel (%p758) target = $region56
        $region55: #{tpu_custom_call.1} parent=51 // pred_region
          %s761 = sand.u32 %s187, 1
          %s762 = scalar_lea.sflag [#allocation4], %s761
          %s763 = sand.u32 %s187, 1
          %s764 = smul.addr %s763, 32
          %s765 = scalar_lea.vmem [#allocation3], %s764
          %766 = dma.done %s762, 512
        $region56: #{tpu_custom_call.1} parent=51 // pred_fallthru
          _
      $region52: #{tpu_custom_call.1} parent=5 // pred_fallthru
        _
    $region6: #{tpu_custom_call.1} parent=1 // loop_footer
      %s20 = sadd.s32 1, %s16
    $region7: #{tpu_custom_call.1} parent=1 // loop_footer_branch
      %15 = sbr.rel target = $region3
    $region8: #{tpu_custom_call.1} parent=1 // loop_exit
      _
    %767 = vsyncpa [#allocation4], 1
    %s768 = scalar_lea.sflag [#allocation4], 1
    %769 = vsyncpa %s768, 1

</llo_original>
